<compile_context>
chip_gen: v6e
topology: v6e:2x2x1
jax: 0.10.0
libtpu: 0.0.40
codegen_flags: <defaults>
</compile_context>

<pallas_src>
import functools

import jax
import jax.numpy as jnp
from jax.experimental import pallas as pl
from jax.experimental.pallas import tpu as pltpu


def _round_up(x, m):
    return ((x + m - 1) // m) * m


def _tpu_vmem_bytes():
    """Physical per-core VMEM; conservative fallback if the query is unavailable."""
    try:
        return int(pltpu.get_tpu_info().vmem_capacity_bytes)
    except Exception:
        return 64 << 20  # v7x per-TensorCore size: safe everywhere


def _tpu_num_tensorcores():
    try:
        info = pltpu.get_tpu_info()
        for name in ("num_tensorcores", "tensorcore_count", "num_cores",
                     "cores_per_chip"):
            v = getattr(info, name, None)
            if v:
                return int(v)
    except Exception:
        pass
    try:
        return int(getattr(jax.devices()[0], "num_cores", 1))
    except Exception:
        return 1


def _bf16_gate_supported():
    """bf16 VPU/EUP exists on v6e/v7x only (v5e and older: f32 gate)."""
    try:
        kind = jax.devices()[0].device_kind.lower()
    except Exception:
        return False
    return ("v6" in kind) or ("v7" in kind)


def _single_buffered(shape, index_map):
    """Grid-invariant block: double-buffering it only wastes VMEM."""
    try:
        return pl.BlockSpec(shape, index_map, pipeline_mode=pl.Buffered(1))
    except TypeError:  # older jax without pipeline_mode on BlockSpec
        return pl.BlockSpec(shape, index_map)


# ----------------------------------------------------------------------------
# Weight preparation (run ONCE, outside the per-call path).
# ----------------------------------------------------------------------------
def prepare_params(params, compute_dtype=None):
    """Fuse, zero-pad, constant-fold and cast DBlock weights once.

    Padding is exact: padded hidden units produce gate value 0 feeding zero head
    rows; padded input/output columns are zero.
    """
    w1, b1, w2, b2, wmu, bmu, wls, bls = params
    in_sz, hid = w1.shape
    out = wmu.shape[1]

    in_p = _round_up(in_sz, 128)
    hid_p = _round_up(hid, 128)
    out_p = _round_up(out, 128)

    f32 = jnp.float32
    wdt = jnp.dtype(compute_dtype) if compute_dtype is not None else jnp.dtype(w1.dtype)

    r = lambda b: jnp.reshape(b, (1, -1)).astype(f32)
    b1, b2, bmu, bls = r(b1), r(b2), r(bmu), r(bls)

    # Fused fc1 || fc2.  fc2 pre-scaled by 0.5: tanh(h2') == tanh(0.5 * h2).
    w12 = jnp.zeros((in_p, 2 * hid_p), wdt)
    w12 = (w12.at[:in_sz, :hid].set(w1.astype(f32).astype(wdt))
               .at[:in_sz, hid_p:hid_p + hid].set((0.5 * w2.astype(f32)).astype(wdt)))
    b12 = jnp.zeros((1, 2 * hid_p), f32)
    b12 = (b12.at[:, :hid].set(b1)
               .at[:, hid_p:hid_p + hid].set(0.5 * b2))

    # Fused fc_mu || fc_logsigma, pre-scaled by 0.5 (folds the sigmoid's 0.5).
    wh = jnp.zeros((hid_p, 2 * out_p), wdt)
    wh = (wh.at[:hid, :out].set((0.5 * wmu.astype(f32)).astype(wdt))
             .at[:hid, out_p:out_p + out].set((0.5 * wls.astype(f32)).astype(wdt)))
    bh = jnp.zeros((1, 2 * out_p), f32)
    bh = (bh.at[:, :out].set(bmu)
             .at[:, out_p:out_p + out].set(bls))

    return dict(w12=w12, b12=b12, wh=wh, bh=bh,
                in_sz=in_sz, hid=hid, out=out,
                in_p=in_p, hid_p=hid_p, out_p=out_p)


# ----------------------------------------------------------------------------
# Kernels
# ----------------------------------------------------------------------------
def _dblock_fused_kernel(x_ref, w12_ref, b12_ref, wh_ref, bh_ref, out_ref, *,
                         hid_p, gate_dtype):
    x = x_ref[...]
    # Fused fc1 || fc2: one MXU push, f32 accumulation, f32 bias add.
    h = jnp.dot(x, w12_ref[...], preferred_element_type=jnp.float32) + b12_ref[...]
    h1 = h[:, :hid_p].astype(gate_dtype)   # lane-aligned split (hid_p % 128 == 0)
    h2 = h[:, hid_p:].astype(gate_dtype)   # already pre-scaled by 0.5 at prep time
    # Gate: 2 EUP tanh per hidden element; bf16 on v6e/v7x, f32 elsewhere.
    g = jnp.tanh(h1) * (jnp.tanh(h2) + 1.0)   # == 2 * tanh(h1) * sigmoid(h2)
    # Fused fc_mu || fc_logsigma (pre-scaled 0.5): one MXU push, lane-dense store.
    y = jnp.dot(g.astype(wh_ref.dtype), wh_ref[...],
                preferred_element_type=jnp.float32) + bh_ref[...]
    out_ref[...] = y.astype(out_ref.dtype)


def _dblock_hblocked_kernel(x_ref, w1_ref, w2_ref, b1_ref, b2_ref, wh_ref, bh_ref,
                            out_ref, acc_ref, *, gate_dtype):
    # Hidden-dimension-blocked variant: grid = (batch tiles, hid chunks).
    k = pl.program_id(1)

    @pl.when(k == 0)
    def _():
        acc_ref[...] = jnp.zeros_like(acc_ref)

    x = x_ref[...]
    h1 = jnp.dot(x, w1_ref[...], preferred_element_type=jnp.float32) + b1_ref[...]
    h2 = jnp.dot(x, w2_ref[...], preferred_element_type=jnp.float32) + b2_ref[...]
    g = jnp.tanh(h1.astype(gate_dtype)) * (jnp.tanh(h2.astype(gate_dtype)) + 1.0)
    acc_ref[...] += jnp.dot(g.astype(wh_ref.dtype), wh_ref[...],
                            preferred_element_type=jnp.float32)

    @pl.when(k == pl.num_programs(1) - 1)
    def _():
        out_ref[...] = (acc_ref[...] + bh_ref[...]).astype(out_ref.dtype)


# ----------------------------------------------------------------------------
# Forward wrapper
# ----------------------------------------------------------------------------
def dblock_forward(x, prep, *, tile_b=None, block_hidden=None):
    """DBlock forward. x: (B, input_size); prep = prepare_params(params, ...)."""
    w12, b12, wh, bh = prep["w12"], prep["b12"], prep["wh"], prep["bh"]
    in_sz, hid, out = prep["in_sz"], prep["hid"], prep["out"]
    in_p, hid_p, out_p = prep["in_p"], prep["hid_p"], prep["out_p"]

    cdt = w12.dtype
    witem = jnp.dtype(cdt).itemsize
    gate_dtype = (jnp.bfloat16 if (cdt == jnp.bfloat16 and _bf16_gate_supported())
                  else jnp.float32)
    gitem = jnp.dtype(gate_dtype).itemsize

    B = x.shape[0]
    assert x.shape[1] == in_sz
    b8 = _round_up(B, 8)

    vmem_cap = _tpu_vmem_bytes()
    budget = int(vmem_cap * 0.80)      # what tiles are planned against
    vmem_limit = int(vmem_cap * 0.875)  # scoped-VMEM limit handed to Mosaic

    # Resident bytes independent of tile_b (weights single-buffered).
    wbytes = (w12.size + wh.size) * witem + (b12.size + bh.size) * 4
    # Per-batch-row bytes: double-buffered x/out tiles + intermediates h/g/y.
    row_bytes = (2 * (in_p + 2 * out_p) * witem
                 + 2 * hid_p * 4                  # h (f32)
                 + hid_p * max(gitem, witem)      # gate / cast temp
                 + 2 * out_p * 4)                 # y (f32)

    fits_fused = wbytes + 8 * row_bytes <= budget
    if block_hidden is None:
        block_hidden = not fits_fused

    if not block_hidden:
        # ----- fused-weight path: one grid axis over batch tiles -----
        if tile_b is None:
            max_rows = max(8, ((budget - wbytes) // row_bytes // 8) * 8)
            tile_b = min(1024, b8, max_rows)
            # Split the batch across grid steps only when >=2 TensorCores can each
            # keep a >=256-row MXU LHS (v7x); pure loss on single-TC v5e/v6e.
            if _tpu_num_tensorcores() >= 2:
                half = _round_up(-(-b8 // 2), 8)
                if half >= 256:
                    tile_b = min(tile_b, half)
        tile_b = max(8, (tile_b // 8) * 8)
        B_p = _round_up(B, tile_b)
        x_p = jnp.zeros((B_p, in_p), cdt).at[:B, :in_sz].set(x.astype(cdt))

        fused = pl.pallas_call(
            functools.partial(_dblock_fused_kernel, hid_p=hid_p,
                              gate_dtype=gate_dtype),
            out_shape=jax.ShapeDtypeStruct((B_p, 2 * out_p), cdt),
            grid_spec=pltpu.PrefetchScalarGridSpec(
                num_scalar_prefetch=0,
                grid=(B_p // tile_b,),
                in_specs=[
                    pl.BlockSpec((tile_b, in_p), lambda i: (i, 0)),
                    _single_buffered((in_p, 2 * hid_p), lambda i: (0, 0)),
                    _single_buffered((1, 2 * hid_p), lambda i: (0, 0)),
                    _single_buffered((hid_p, 2 * out_p), lambda i: (0, 0)),
                    _single_buffered((1, 2 * out_p), lambda i: (0, 0)),
                ],
                out_specs=pl.BlockSpec((tile_b, 2 * out_p), lambda i: (i, 0)),
            ),
            compiler_params=pltpu.CompilerParams(
                dimension_semantics=("parallel",),
                vmem_limit_bytes=vmem_limit),
        )(x_p, w12, b12, wh, bh)
    else:
        # ----- hidden-blocked path: (batch tiles, hid chunks) grid, f32 acc -----
        if tile_b is None:
            tile_b = min(256, b8)
        tile_b = max(8, (tile_b // 8) * 8)
        B_p = _round_up(B, tile_b)

        def blocked_bytes(th):
            chunk = (2 * in_p * th + th * 2 * out_p) * witem + 2 * th * 4
            io = 2 * tile_b * (in_p + 2 * out_p) * witem
            acc = tile_b * 2 * out_p * 4
            inter = tile_b * th * (2 * 4 + gitem) + tile_b * 2 * out_p * 4
            return 2 * chunk + io + acc + inter + 2 * out_p * 4

        tile_h = 128
        for th in range(128, hid_p + 1, 128):
            if hid_p % th == 0 and blocked_bytes(th) <= budget:
                tile_h = th
        kofs = hid_p // tile_h   # block-column offset of h2 inside fused w12 / b12

        x_p = jnp.zeros((B_p, in_p), cdt).at[:B, :in_sz].set(x.astype(cdt))

        fused = pl.pallas_call(
            functools.partial(_dblock_hblocked_kernel, gate_dtype=gate_dtype),
            out_shape=jax.ShapeDtypeStruct((B_p, 2 * out_p), cdt),
            grid_spec=pltpu.PrefetchScalarGridSpec(
                num_scalar_prefetch=0,
                grid=(B_p // tile_b, hid_p // tile_h),
                in_specs=[
                    pl.BlockSpec((tile_b, in_p), lambda i, k: (i, 0)),
                    pl.BlockSpec((in_p, tile_h), lambda i, k: (0, k)),
                    pl.BlockSpec((in_p, tile_h), lambda i, k: (0, k + kofs)),
                    pl.BlockSpec((1, tile_h), lambda i, k: (0, k)),
                    pl.BlockSpec((1, tile_h), lambda i, k: (0, k + kofs)),
                    pl.BlockSpec((tile_h, 2 * out_p), lambda i, k: (k, 0)),
                    _single_buffered((1, 2 * out_p), lambda i, k: (0, 0)),
                ],
                out_specs=pl.BlockSpec((tile_b, 2 * out_p), lambda i, k: (i, 0)),
                scratch_shapes=[pltpu.VMEM((tile_b, 2 * out_p), jnp.float32)],
            ),
            compiler_params=pltpu.CompilerParams(
                dimension_semantics=("parallel", "arbitrary"),
                vmem_limit_bytes=vmem_limit),
        )(x_p, w12, w12, b12, b12, wh, bh)

    mu = fused[:B, :out]
    logsigma = fused[:B, out_p:out_p + out]
    return mu, logsigma


def dblock_apply(x, params, **kwargs):
    """Convenience (slow) path: re-prepares weights; prefer prepare_params() once."""
    return dblock_forward(x, prepare_params(params), **kwargs)


# ----------------------------------------------------------------------------
# Reference + test
# ----------------------------------------------------------------------------
def init_params(key, input_size, hidden_size, output_size, dtype=jnp.float32):
    ks = jax.random.split(key, 8)

    def lin(kw, kb, fin, fout):
        bound = 1.0 / (fin ** 0.5)
        w = jax.random.uniform(kw, (fin, fout), dtype, -bound, bound)
        b = jax.random.uniform(kb, (1, fout), dtype, -bound, bound)
        return w, b

    w1, b1 = lin(ks[0], ks[1], input_size, hidden_size)
    w2, b2 = lin(ks[2], ks[3], input_size, hidden_size)
    wmu, bmu = lin(ks[4], ks[5], hidden_size, output_size)
    wls, bls = lin(ks[6], ks[7], hidden_size, output_size)
    return (w1, b1, w2, b2, wmu, bmu, wls, bls)


def dblock_reference(x, params):
    w1, b1, w2, b2, wmu, bmu, wls, bls = params
    t = jnp.tanh(x @ w1 + b1) * jax.nn.sigmoid(x @ w2 + b2)
    return t @ wmu + bmu, t @ wls + bls


if __name__ == "__main__":
    key = jax.random.PRNGKey(0)
    k_x, k_p = jax.random.split(key)

    batch, input_size, hidden_size, output_size = 8, 32, 32, 16
    x = jax.random.normal(k_x, (batch, input_size), dtype=jnp.float32)
    params = init_params(k_p, input_size, hidden_size, output_size)
    mu_ref, ls_ref = dblock_reference(x, params)

    # f32, fused-weight path: tight correctness check.
    prep = prepare_params(params)
    mu, logsigma = jax.block_until_ready(dblock_forward(x, prep))
    assert mu.shape == (batch, output_size)
    assert logsigma.shape == (batch, output_size)
    assert jnp.allclose(mu, mu_ref, atol=1e-4, rtol=1e-4)
    assert jnp.allclose(logsigma, ls_ref, atol=1e-4, rtol=1e-4)

    # f32, hidden-blocked path (forced here; auto-selected when the fused weights
    # exceed the VMEM budget, e.g. large hidden sizes on v7x's 64 MiB).
    mu_b, ls_b = jax.block_until_ready(
        dblock_forward(x, prep, block_hidden=True, tile_b=8))
    assert jnp.allclose(mu_b, mu_ref, atol=1e-4, rtol=1e-4)
    assert jnp.allclose(ls_b, ls_ref, atol=1e-4, rtol=1e-4)

    # bf16 compute path (v6e/v7x MXU / HBM-traffic win): loose tolerance.
    prep_bf16 = prepare_params(params, compute_dtype=jnp.bfloat16)
    mu_bf, ls_bf = jax.block_until_ready(dblock_forward(x, prep_bf16))
    assert jnp.allclose(mu_bf.astype(jnp.float32), mu_ref, atol=5e-2, rtol=5e-2)
    assert jnp.allclose(ls_bf.astype(jnp.float32), ls_ref, atol=5e-2, rtol=5e-2)

    print("KERNEL_OK")
</pallas_src>

<mosaic_0001>
module attributes {stable_mosaic.version = 11 : i64} {
  func.func @_dblock_fused_kernel(%arg0: i32, %arg1: memref<8x128xf32, #tpu.memory_space<vmem>>, %arg2: memref<128x256xf32, #tpu.memory_space<vmem>>, %arg3: memref<1x256xf32, #tpu.memory_space<vmem>>, %arg4: memref<128x256xf32, #tpu.memory_space<vmem>>, %arg5: memref<1x256xf32, #tpu.memory_space<vmem>>, %arg6: memref<8x256xf32, #tpu.memory_space<vmem>>) attributes {dimension_semantics = [#tpu.dimension_semantics<parallel>], iteration_bounds = array<i64: 1>, scalar_prefetch = 0 : i64, scratch_operands = 0 : i64, tpu.core_type = #tpu.core_type<tc>, window_params = [{transform_indices = @transform_0, window_bounds = array<i64: 8, 128>}, {pipeline_mode = #tpu.pipeline_mode<synchronous>, transform_indices = @transform_1, window_bounds = array<i64: 128, 256>}, {pipeline_mode = #tpu.pipeline_mode<synchronous>, transform_indices = @transform_2, window_bounds = array<i64: 1, 256>}, {pipeline_mode = #tpu.pipeline_mode<synchronous>, transform_indices = @transform_3, window_bounds = array<i64: 128, 256>}, {pipeline_mode = #tpu.pipeline_mode<synchronous>, transform_indices = @transform_4, window_bounds = array<i64: 1, 256>}, {transform_indices = @transform_5, window_bounds = array<i64: 8, 256>}]} {
    %c0 = arith.constant 0 : index
    %c0_0 = arith.constant 0 : index
    %0 = vector.load %arg1[%c0, %c0_0] : memref<8x128xf32, #tpu.memory_space<vmem>>, vector<8x128xf32>
    %c0_1 = arith.constant 0 : index
    %c0_2 = arith.constant 0 : index
    %1 = vector.load %arg2[%c0_1, %c0_2] : memref<128x256xf32, #tpu.memory_space<vmem>>, vector<128x256xf32>
    %cst = arith.constant dense<0.000000e+00> : vector<8x256xf32>
    %2 = tpu.matmul %0, %1, %cst {dimension_numbers = #tpu.dot_dimension_numbers<[1], [0], [0], [1], [0, 0, 1, 1], [], []>} : vector<8x128xf32>, vector<128x256xf32>, vector<8x256xf32> -> vector<8x256xf32>
    %c0_3 = arith.constant 0 : index
    %c0_4 = arith.constant 0 : index
    %3 = vector.load %arg3[%c0_3, %c0_4] : memref<1x256xf32, #tpu.memory_space<vmem>>, vector<1x256xf32>
    %4 = vector.broadcast %3 : vector<1x256xf32> to vector<8x256xf32>
    %5 = arith.addf %2, %4 : vector<8x256xf32>
    %6 = vector.extract_strided_slice %5 {offsets = [0, 0], sizes = [8, 128], strides = [1, 1]} : vector<8x256xf32> to vector<8x128xf32>
    %7 = vector.extract_strided_slice %5 {offsets = [0, 128], sizes = [8, 128], strides = [1, 1]} : vector<8x256xf32> to vector<8x128xf32>
    %8 = math.tanh %6 : vector<8x128xf32>
    %9 = math.tanh %7 : vector<8x128xf32>
    %cst_5 = arith.constant 1.000000e+00 : f32
    %10 = vector.broadcast %cst_5 : f32 to vector<8x128xf32>
    %11 = arith.addf %9, %10 : vector<8x128xf32>
    %12 = arith.mulf %8, %11 : vector<8x128xf32>
    %c0_6 = arith.constant 0 : index
    %c0_7 = arith.constant 0 : index
    %13 = vector.load %arg4[%c0_6, %c0_7] : memref<128x256xf32, #tpu.memory_space<vmem>>, vector<128x256xf32>
    %cst_8 = arith.constant dense<0.000000e+00> : vector<8x256xf32>
    %14 = tpu.matmul %12, %13, %cst_8 {dimension_numbers = #tpu.dot_dimension_numbers<[1], [0], [0], [1], [0, 0, 1, 1], [], []>} : vector<8x128xf32>, vector<128x256xf32>, vector<8x256xf32> -> vector<8x256xf32>
    %c0_9 = arith.constant 0 : index
    %c0_10 = arith.constant 0 : index
    %15 = vector.load %arg5[%c0_9, %c0_10] : memref<1x256xf32, #tpu.memory_space<vmem>>, vector<1x256xf32>
    %16 = vector.broadcast %15 : vector<1x256xf32> to vector<8x256xf32>
    %17 = arith.addf %14, %16 : vector<8x256xf32>
    %c0_11 = arith.constant 0 : index
    %c0_12 = arith.constant 0 : index
    %18 = vector.load %arg6[%c0_11, %c0_12] : memref<8x256xf32, #tpu.memory_space<vmem>>, vector<8x256xf32>
    tpu.vector_store %arg6[%c0_11, %c0_12], %17 {strides = array<i32>} : memref<8x256xf32, #tpu.memory_space<vmem>>, vector<8x256xf32>,
    return
  }
  func.func @transform_0(%arg0: i32) -> (i32, i32) {
    %c0_i32 = arith.constant 0 : i32
    %c0_i32_0 = arith.constant 0 : i32
    return %arg0, %c0_i32 : i32, i32
  }
  func.func @transform_1(%arg0: i32) -> (i32, i32) {
    %c0_i32 = arith.constant 0 : i32
    %c0_i32_0 = arith.constant 0 : i32
    %c0_i32_1 = arith.constant 0 : i32
    return %c0_i32, %c0_i32_0 : i32, i32
  }
  func.func @transform_2(%arg0: i32) -> (i32, i32) {
    %c0_i32 = arith.constant 0 : i32
    %c0_i32_0 = arith.constant 0 : i32
    %c0_i32_1 = arith.constant 0 : i32
    return %c0_i32, %c0_i32_0 : i32, i32
  }
  func.func @transform_3(%arg0: i32) -> (i32, i32) {
    %c0_i32 = arith.constant 0 : i32
    %c0_i32_0 = arith.constant 0 : i32
    %c0_i32_1 = arith.constant 0 : i32
    return %c0_i32, %c0_i32_0 : i32, i32
  }
  func.func @transform_4(%arg0: i32) -> (i32, i32) {
    %c0_i32 = arith.constant 0 : i32
    %c0_i32_0 = arith.constant 0 : i32
    %c0_i32_1 = arith.constant 0 : i32
    return %c0_i32, %c0_i32_0 : i32, i32
  }
  func.func @transform_5(%arg0: i32) -> (i32, i32) {
    %c0_i32 = arith.constant 0 : i32
    %c0_i32_0 = arith.constant 0 : i32
    return %arg0, %c0_i32 : i32, i32
  }
}

</mosaic_0001>

<llo_original>
// kernel: tpu_custom_call.1
$region0: #{tpu_custom_call.1}
  #allocation0 [shape = 'u32[]', space=smem, size = 0x4, offset = 0x4, fixed_abs, tag = 'smem constant byte address 0x4 - core index']
  #allocation1 [shape = 'u32[144,128]{1,0:T(1,128)}', space=vmem, size = 0x12000, scoped, tag = 'internal scratch']
  %s0 = inlined_call_operand.hbm [shape: f32[8,128], index: 0, kind: input, shape index: {}]
  %s1 = inlined_call_operand.hbm [shape: f32[128,256], index: 1, kind: input, shape index: {}]
  %s2 = inlined_call_operand.vmem [shape: f32[1,256], index: 2, kind: input, shape index: {}]
  %s3 = inlined_call_operand.hbm [shape: f32[128,256], index: 3, kind: input, shape index: {}]
  %s4 = inlined_call_operand.vmem [shape: f32[1,256], index: 4, kind: input, shape index: {}]
  %s5 = inlined_call_operand.hbm [shape: f32[8,256], index: 5, kind: output, shape index: {}]
  %s6 = sld [smem:[#allocation0]]
  $region42: #{tpu_custom_call.1} parent=0
    _
  %s8 = ssub.s32 1, %s6
  %s9 = scalar_select 0, %s8, %s6
  $region1: #{tpu_custom_call.1} parent=0
    #allocation2 [shape = 'u8[4096]{0}', space=vmem, size = 0x1000, scoped, tag = 'input window, operand 0, single buffered']
    #allocation3 [shape = 's32[1]{0}', space=sflag, size = 0x4, scoped, tag = 'scoped memory for tpu_custom_call.1']
    #allocation4 [shape = 's32[1]{0}', space=sflag, size = 0x4, scoped, tag = 'scoped memory for tpu_custom_call.1']
    #allocation5 [shape = 'u8[131072]{0}', space=vmem, size = 0x20000, scoped, tag = 'input window, operand 1, single buffered']
    #allocation6 [shape = 's32[1]{0}', space=sflag, size = 0x4, scoped, tag = 'scoped memory for tpu_custom_call.1']
    #allocation7 [shape = 'u8[131072]{0}', space=vmem, size = 0x20000, scoped, tag = 'input window, operand 3, single buffered']
    #allocation8 [shape = 'u8[8192]{0}', space=vmem, size = 0x2000, scoped, tag = 'output window, operand 0, single buffered']
    %10 = vsyncpa [#allocation3], 0
    %11 = vsyncpa [#allocation6], 0
    %12 = vsyncpa [#allocation4], 0
    // Predicated region
    $region2: #{tpu_custom_call.1} parent=1 // pred_check
      _
    $region3: #{tpu_custom_call.1} parent=1 // pred_check_branch
      %14 = sbr.rel (0) target = $region5
    $region4: #{tpu_custom_call.1} parent=1 // pred_region
      %s16 = ssub.s32 128, 128
      %17 = vsyncadd [#allocation3], %s16
      %s19 = sshll.u32 [#allocation2], 4
      %s20 = int_to_ptr.vmem [resolvable:$true] %s19
      %22 = dma.hbm_to_vmem [thread:$0]  %s0, 128, %s20, [#allocation3]
    $region5: #{tpu_custom_call.1} parent=1 // pred_fallthru
      _
    // Predicated region
    $region6: #{tpu_custom_call.1} parent=1 // pred_check
      _
    $region7: #{tpu_custom_call.1} parent=1 // pred_check_branch
      %24 = sbr.rel (0) target = $region9
    $region8: #{tpu_custom_call.1} parent=1 // pred_region
      %s26 = ssub.s32 4096, 4096
      %27 = vsyncadd [#allocation6], %s26
      %s28 = sshll.u32 [#allocation5], 4
      %s29 = int_to_ptr.vmem [resolvable:$true] %s28
      %34 = dma.hbm_to_vmem [thread:$0]  %s1, 4096, %s29, [#allocation6], 256, 256, 16
    $region9: #{tpu_custom_call.1} parent=1 // pred_fallthru
      _
    // Predicated region
    $region10: #{tpu_custom_call.1} parent=1 // pred_check
      _
    $region11: #{tpu_custom_call.1} parent=1 // pred_check_branch
      %36 = sbr.rel (0) target = $region13
    $region12: #{tpu_custom_call.1} parent=1 // pred_region
      _
    $region13: #{tpu_custom_call.1} parent=1 // pred_fallthru
      _
    // Predicated region
    $region14: #{tpu_custom_call.1} parent=1 // pred_check
      _
    $region15: #{tpu_custom_call.1} parent=1 // pred_check_branch
      %38 = sbr.rel (0) target = $region17
    $region16: #{tpu_custom_call.1} parent=1 // pred_region
      %s40 = ssub.s32 4096, 4096
      %41 = vsyncadd [#allocation6], %s40
      %s42 = sshll.u32 [#allocation7], 4
      %s43 = int_to_ptr.vmem [resolvable:$true] %s42
      %48 = dma.hbm_to_vmem [thread:$0]  %s3, 4096, %s43, [#allocation6], 256, 256, 16
    $region17: #{tpu_custom_call.1} parent=1 // pred_fallthru
      _
    // Predicated region
    $region18: #{tpu_custom_call.1} parent=1 // pred_check
      _
    $region19: #{tpu_custom_call.1} parent=1 // pred_check_branch
      %50 = sbr.rel (0) target = $region21
    $region20: #{tpu_custom_call.1} parent=1 // pred_region
      _
    $region21: #{tpu_custom_call.1} parent=1 // pred_fallthru
      _
    // Predicated region
    $region22: #{tpu_custom_call.1} parent=1 // pred_check
      _
    $region23: #{tpu_custom_call.1} parent=1 // pred_check_branch
      %52 = sbr.rel (0) target = $region25
    $region24: #{tpu_custom_call.1} parent=1 // pred_region
      %53 = dma.done [#allocation3], 128
    $region25: #{tpu_custom_call.1} parent=1 // pred_fallthru
      _
    // Predicated region
    $region26: #{tpu_custom_call.1} parent=1 // pred_check
      _
    $region27: #{tpu_custom_call.1} parent=1 // pred_check_branch
      %55 = sbr.rel (0) target = $region29
    $region28: #{tpu_custom_call.1} parent=1 // pred_region
      %56 = dma.done [#allocation6], 4096
    $region29: #{tpu_custom_call.1} parent=1 // pred_fallthru
      _
    // Predicated region
    $region30: #{tpu_custom_call.1} parent=1 // pred_check
      _
    $region31: #{tpu_custom_call.1} parent=1 // pred_check_branch
      %58 = sbr.rel (0) target = $region33
    $region32: #{tpu_custom_call.1} parent=1 // pred_region
      %59 = dma.done [#allocation6], 4096
    $region33: #{tpu_custom_call.1} parent=1 // pred_fallthru
      _
    %v60 = vld [vmem:[#allocation2] sm:$0xff]
    %v61 = vld [vmem:[#allocation5] sm:$0xff]
    %v62 = vld [vmem:[#allocation5 + $0x8] sm:$0xff]
    %v63 = vld [vmem:[#allocation5 + $0x10] sm:$0xff]
    %v64 = vld [vmem:[#allocation5 + $0x18] sm:$0xff]
    %v65 = vld [vmem:[#allocation5 + $0x20] sm:$0xff]
    %v66 = vld [vmem:[#allocation5 + $0x28] sm:$0xff]
    %v67 = vld [vmem:[#allocation5 + $0x30] sm:$0xff]
    %v68 = vld [vmem:[#allocation5 + $0x38] sm:$0xff]
    %v69 = vld [vmem:[#allocation5 + $0x40] sm:$0xff]
    %v70 = vld [vmem:[#allocation5 + $0x48] sm:$0xff]
    %v71 = vld [vmem:[#allocation5 + $0x50] sm:$0xff]
    %v72 = vld [vmem:[#allocation5 + $0x58] sm:$0xff]
    %v73 = vld [vmem:[#allocation5 + $0x60] sm:$0xff]
    %v74 = vld [vmem:[#allocation5 + $0x68] sm:$0xff]
    %v75 = vld [vmem:[#allocation5 + $0x70] sm:$0xff]
    %v76 = vld [vmem:[#allocation5 + $0x78] sm:$0xff]
    %v77 = vld [vmem:[#allocation5 + $0x80] sm:$0xff]
    %v78 = vld [vmem:[#allocation5 + $0x88] sm:$0xff]
    %v79 = vld [vmem:[#allocation5 + $0x90] sm:$0xff]
    %v80 = vld [vmem:[#allocation5 + $0x98] sm:$0xff]
    %v81 = vld [vmem:[#allocation5 + $0xa0] sm:$0xff]
    %v82 = vld [vmem:[#allocation5 + $0xa8] sm:$0xff]
    %v83 = vld [vmem:[#allocation5 + $0xb0] sm:$0xff]
    %v84 = vld [vmem:[#allocation5 + $0xb8] sm:$0xff]
    %v85 = vld [vmem:[#allocation5 + $0xc0] sm:$0xff]
    %v86 = vld [vmem:[#allocation5 + $0xc8] sm:$0xff]
    %v87 = vld [vmem:[#allocation5 + $0xd0] sm:$0xff]
    %v88 = vld [vmem:[#allocation5 + $0xd8] sm:$0xff]
    %v89 = vld [vmem:[#allocation5 + $0xe0] sm:$0xff]
    %v90 = vld [vmem:[#allocation5 + $0xe8] sm:$0xff]
    %v91 = vld [vmem:[#allocation5 + $0xf0] sm:$0xff]
    %v92 = vld [vmem:[#allocation5 + $0xf8] sm:$0xff]
    %v93 = vld [vmem:[%s2] sm:$0x3]
    %v95 = vlaneseq
    %v96 = vshrl.u32 %v95, 7
    %v97 = vsub.s32 0, %v96
    %v98 = vrot.slane %v93, %v97
    %v99 = vlaneseq
    %v100 = vshrl.u32 %v99, 7
    %v101 = vsub.s32 1, %v100
    %v102 = vrot.slane %v93, %v101
    %105 = vmatprep.subr.mxu0 %v92
    %106 = vmatpush1.msra.mxu0 %v91
    %107 = vmatprep.subr.mxu0 %v90
    %108 = vmatpush1.msra.mxu0 %v89
    %109 = vmatprep.subr.mxu0 %v88
    %110 = vmatpush1.msra.mxu0 %v87
    %111 = vmatprep.subr.mxu0 %v86
    %112 = vmatpush1.msra.mxu0 %v85
    %113 = vmatprep.subr.mxu0 %v84
    %114 = vmatpush1.msra.mxu0 %v83
    %115 = vmatprep.subr.mxu0 %v82
    %116 = vmatpush1.msra.mxu0 %v81
    %117 = vmatprep.subr.mxu0 %v80
    %118 = vmatpush1.msra.mxu0 %v79
    %119 = vmatprep.subr.mxu0 %v78
    %120 = vmatpush1.msra.mxu0 %v77
    %121 = vmatprep.subr.mxu0 %v76
    %122 = vmatpush1.msra.mxu0 %v75
    %123 = vmatprep.subr.mxu0 %v74
    %124 = vmatpush1.msra.mxu0 %v73
    %125 = vmatprep.subr.mxu0 %v72
    %126 = vmatpush1.msra.mxu0 %v71
    %127 = vmatprep.subr.mxu0 %v70
    %128 = vmatpush1.msra.mxu0 %v69
    %129 = vmatprep.subr.mxu0 %v68
    %130 = vmatpush1.msra.mxu0 %v67
    %131 = vmatprep.subr.mxu0 %v66
    %132 = vmatpush1.msra.mxu0 %v65
    %133 = vmatprep.subr.mxu0 %v64
    %134 = vmatpush1.msra.mxu0 %v63
    %135 = vmatprep.subr.mxu0 %v62
    %136 = vmatpush1.msra.mxu0 %v61
    %137 = vmatprep.subr.mxu0 0.0
    %138 = vmatpush2.msra.mxu0 0.0
    %139 = vmatprep.subr.mxu0 0.0
    %140 = vmatpush2.msra.mxu0 0.0
    %141 = vmatprep.subr.mxu0 0.0
    %142 = vmatpush2.msra.mxu0 0.0
    %143 = vmatprep.subr.mxu0 0.0
    %144 = vmatpush2.msra.mxu0 0.0
    %145 = vmatprep.subr.mxu0 0.0
    %146 = vmatpush2.msra.mxu0 0.0
    %147 = vmatprep.subr.mxu0 0.0
    %148 = vmatpush2.msra.mxu0 0.0
    %149 = vmatprep.subr.mxu0 0.0
    %150 = vmatpush2.msra.mxu0 0.0
    %151 = vmatprep.subr.mxu0 0.0
    %152 = vmatpush2.msra.mxu0 0.0
    %153 = vmatprep.subr.mxu0 0.0
    %154 = vmatpush2.msra.mxu0 0.0
    %155 = vmatprep.subr.mxu0 0.0
    %156 = vmatpush2.msra.mxu0 0.0
    %157 = vmatprep.subr.mxu0 0.0
    %158 = vmatpush2.msra.mxu0 0.0
    %159 = vmatprep.subr.mxu0 0.0
    %160 = vmatpush2.msra.mxu0 0.0
    %161 = vmatprep.subr.mxu0 0.0
    %162 = vmatpush2.msra.mxu0 0.0
    %163 = vmatprep.subr.mxu0 0.0
    %164 = vmatpush2.msra.mxu0 0.0
    %165 = vmatprep.subr.mxu0 0.0
    %166 = vmatpush2.msra.mxu0 0.0
    %167 = vmatprep.subr.mxu0 0.0
    %168 = vmatpush2.msra.mxu0 0.0
    %169 = vmatprep.mubr.f32.mxu0 0.0
    %170 = vmatmul.mubr.f32.gmra.mxu0 %v60
    %v171 = vpop.f32.mrf.mxu0
    %v172 = vadd.f32 %v98, %v171
    %v173 = vpop.f32.mrf.mxu0
    %v174 = vadd.f32 %v102, %v173
    %175 = vdwg.mxu0
    %v176 = vtanh.pop %v172
    %v177 = vtanh.pop %v174
    %v178 = vadd.f32 %v177, 1.0
    %v179 = vmul.f32 %v176, %v178
    %v180 = vld [vmem:[#allocation7] sm:$0xff]
    %v181 = vld [vmem:[#allocation7 + $0x8] sm:$0xff]
    %v182 = vld [vmem:[#allocation7 + $0x10] sm:$0xff]
    %v183 = vld [vmem:[#allocation7 + $0x18] sm:$0xff]
    %v184 = vld [vmem:[#allocation7 + $0x20] sm:$0xff]
    %v185 = vld [vmem:[#allocation7 + $0x28] sm:$0xff]
    %v186 = vld [vmem:[#allocation7 + $0x30] sm:$0xff]
    %v187 = vld [vmem:[#allocation7 + $0x38] sm:$0xff]
    %v188 = vld [vmem:[#allocation7 + $0x40] sm:$0xff]
    %v189 = vld [vmem:[#allocation7 + $0x48] sm:$0xff]
    %v190 = vld [vmem:[#allocation7 + $0x50] sm:$0xff]
    %v191 = vld [vmem:[#allocation7 + $0x58] sm:$0xff]
    %v192 = vld [vmem:[#allocation7 + $0x60] sm:$0xff]
    %v193 = vld [vmem:[#allocation7 + $0x68] sm:$0xff]
    %v194 = vld [vmem:[#allocation7 + $0x70] sm:$0xff]
    %v195 = vld [vmem:[#allocation7 + $0x78] sm:$0xff]
    %v196 = vld [vmem:[#allocation7 + $0x80] sm:$0xff]
    %v197 = vld [vmem:[#allocation7 + $0x88] sm:$0xff]
    %v198 = vld [vmem:[#allocation7 + $0x90] sm:$0xff]
    %v199 = vld [vmem:[#allocation7 + $0x98] sm:$0xff]
    %v200 = vld [vmem:[#allocation7 + $0xa0] sm:$0xff]
    %v201 = vld [vmem:[#allocation7 + $0xa8] sm:$0xff]
    %v202 = vld [vmem:[#allocation7 + $0xb0] sm:$0xff]
    %v203 = vld [vmem:[#allocation7 + $0xb8] sm:$0xff]
    %v204 = vld [vmem:[#allocation7 + $0xc0] sm:$0xff]
    %v205 = vld [vmem:[#allocation7 + $0xc8] sm:$0xff]
    %v206 = vld [vmem:[#allocation7 + $0xd0] sm:$0xff]
    %v207 = vld [vmem:[#allocation7 + $0xd8] sm:$0xff]
    %v208 = vld [vmem:[#allocation7 + $0xe0] sm:$0xff]
    %v209 = vld [vmem:[#allocation7 + $0xe8] sm:$0xff]
    %v210 = vld [vmem:[#allocation7 + $0xf0] sm:$0xff]
    %v211 = vld [vmem:[#allocation7 + $0xf8] sm:$0xff]
    %v212 = vld [vmem:[%s4] sm:$0x3]
    %v214 = vlaneseq
    %v215 = vshrl.u32 %v214, 7
    %v216 = vsub.s32 0, %v215
    %v217 = vrot.slane %v212, %v216
    %v218 = vlaneseq
    %v219 = vshrl.u32 %v218, 7
    %v220 = vsub.s32 1, %v219
    %v221 = vrot.slane %v212, %v220
    %224 = vmatprep.subr.mxu0 %v211
    %225 = vmatpush1.msra.mxu0 %v210
    %226 = vmatprep.subr.mxu0 %v209
    %227 = vmatpush1.msra.mxu0 %v208
    %228 = vmatprep.subr.mxu0 %v207
    %229 = vmatpush1.msra.mxu0 %v206
    %230 = vmatprep.subr.mxu0 %v205
    %231 = vmatpush1.msra.mxu0 %v204
    %232 = vmatprep.subr.mxu0 %v203
    %233 = vmatpush1.msra.mxu0 %v202
    %234 = vmatprep.subr.mxu0 %v201
    %235 = vmatpush1.msra.mxu0 %v200
    %236 = vmatprep.subr.mxu0 %v199
    %237 = vmatpush1.msra.mxu0 %v198
    %238 = vmatprep.subr.mxu0 %v197
    %239 = vmatpush1.msra.mxu0 %v196
    %240 = vmatprep.subr.mxu0 %v195
    %241 = vmatpush1.msra.mxu0 %v194
    %242 = vmatprep.subr.mxu0 %v193
    %243 = vmatpush1.msra.mxu0 %v192
    %244 = vmatprep.subr.mxu0 %v191
    %245 = vmatpush1.msra.mxu0 %v190
    %246 = vmatprep.subr.mxu0 %v189
    %247 = vmatpush1.msra.mxu0 %v188
    %248 = vmatprep.subr.mxu0 %v187
    %249 = vmatpush1.msra.mxu0 %v186
    %250 = vmatprep.subr.mxu0 %v185
    %251 = vmatpush1.msra.mxu0 %v184
    %252 = vmatprep.subr.mxu0 %v183
    %253 = vmatpush1.msra.mxu0 %v182
    %254 = vmatprep.subr.mxu0 %v181
    %255 = vmatpush1.msra.mxu0 %v180
    %256 = vmatprep.subr.mxu0 0.0
    %257 = vmatpush2.msra.mxu0 0.0
    %258 = vmatprep.subr.mxu0 0.0
    %259 = vmatpush2.msra.mxu0 0.0
    %260 = vmatprep.subr.mxu0 0.0
    %261 = vmatpush2.msra.mxu0 0.0
    %262 = vmatprep.subr.mxu0 0.0
    %263 = vmatpush2.msra.mxu0 0.0
    %264 = vmatprep.subr.mxu0 0.0
    %265 = vmatpush2.msra.mxu0 0.0
    %266 = vmatprep.subr.mxu0 0.0
    %267 = vmatpush2.msra.mxu0 0.0
    %268 = vmatprep.subr.mxu0 0.0
    %269 = vmatpush2.msra.mxu0 0.0
    %270 = vmatprep.subr.mxu0 0.0
    %271 = vmatpush2.msra.mxu0 0.0
    %272 = vmatprep.subr.mxu0 0.0
    %273 = vmatpush2.msra.mxu0 0.0
    %274 = vmatprep.subr.mxu0 0.0
    %275 = vmatpush2.msra.mxu0 0.0
    %276 = vmatprep.subr.mxu0 0.0
    %277 = vmatpush2.msra.mxu0 0.0
    %278 = vmatprep.subr.mxu0 0.0
    %279 = vmatpush2.msra.mxu0 0.0
    %280 = vmatprep.subr.mxu0 0.0
    %281 = vmatpush2.msra.mxu0 0.0
    %282 = vmatprep.subr.mxu0 0.0
    %283 = vmatpush2.msra.mxu0 0.0
    %284 = vmatprep.subr.mxu0 0.0
    %285 = vmatpush2.msra.mxu0 0.0
    %286 = vmatprep.subr.mxu0 0.0
    %287 = vmatpush2.msra.mxu0 0.0
    %288 = vmatprep.mubr.f32.mxu0 0.0
    %289 = vmatmul.mubr.f32.gmra.mxu0 %v179
    %v290 = vpop.f32.mrf.mxu0
    %v291 = vadd.f32 %v217, %v290
    %v292 = vpop.f32.mrf.mxu0
    %v293 = vadd.f32 %v221, %v292
    %294 = vdwg.mxu0
    %295 = vst [vmem:[#allocation8] sm:$0xff] %v291
    %296 = vst [vmem:[#allocation8 + $0x8] sm:$0xff] %v293
    // Predicated region
    $region34: #{tpu_custom_call.1} parent=1 // pred_check
      _
    $region35: #{tpu_custom_call.1} parent=1 // pred_check_branch
      %298 = sbr.rel (0) target = $region37
    $region36: #{tpu_custom_call.1} parent=1 // pred_region
      %s300 = ssub.s32 256, 256
      %301 = vsyncadd [#allocation4], %s300
      %s303 = sshll.u32 [#allocation8], 4
      %s304 = int_to_ptr.vmem [resolvable:$true] %s303
      %306 = dma.vmem_to_hbm [thread:$0]  %s304, 256, %s5, [#allocation4]
    $region37: #{tpu_custom_call.1} parent=1 // pred_fallthru
      _
    // Predicated region
    $region38: #{tpu_custom_call.1} parent=1 // pred_check
      _
    $region39: #{tpu_custom_call.1} parent=1 // pred_check_branch
      %308 = sbr.rel (0) target = $region41
    $region40: #{tpu_custom_call.1} parent=1 // pred_region
      %309 = dma.done [#allocation4], 256
    $region41: #{tpu_custom_call.1} parent=1 // pred_fallthru
      _
    %310 = vsyncpa [#allocation3], 1
    %311 = vsyncpa [#allocation6], 1
    %312 = vsyncpa [#allocation4], 1

</llo_original>
